<compile_context>
chip_gen: v5e
topology: v5e:2x2
jax: 0.10.0
libtpu: 0.0.40
codegen_flags: <defaults>
</compile_context>

<pallas_src>
import functools

import jax
import jax.numpy as jnp
from jax import lax
from jax.experimental import pallas as pl
from jax.experimental.pallas import tpu as pltpu

CLASS_NUM = 9
EDGE_THRESH = 0.7
IGNORE_INDEX = 255


def _loss_kernel(logits_ref, tgt_ref, edge_ref, acc_ref, *, hw_valid, half_tiles):
    """One (TM, LP) pixel slab of one image half.

    logits_ref: (C, TM, LP)  native dtype
    tgt_ref:    (TM, LP)     native integer dtype
    edge_ref:   (Ce, TM, LP) native dtype
    acc_ref:    (3, TM, LP)  f32 lane-wise partial sums
                [0]=focal, [1]=edge CE, [2]=valid-pixel count;
                resident across the tile ("arbitrary") grid axis.
    """
    hh = pl.program_id(0)          # image half (megacore split)
    ii = pl.program_id(2)          # pixel tile within the half
    c, tm, lp = logits_ref.shape

    @pl.when(ii == 0)
    def _():
        acc_ref[...] = jnp.zeros_like(acc_ref)

    logits = logits_ref[...].astype(jnp.float32)       # (C, TM, LP)
    tgt = tgt_ref[...].astype(jnp.int32)               # (TM, LP)

    # Logical pixel index of every lane in this tile; pixels past H*W (tail of
    # a partial boundary block or a fully OOB half-tile) contribute nothing.
    # All masked uses are jnp.where selects, so garbage/NaN never propagates.
    t = hh * half_tiles + ii
    row = t * tm + lax.broadcasted_iota(jnp.int32, (tm, lp), 0)
    lane = lax.broadcasted_iota(jnp.int32, (tm, lp), 1)
    in_range = (row * lp + lane) < hw_valid            # (TM, LP) bool

    # Numerically stable softmax stats; class reduce over axis 0 is
    # elementwise across C full (TM, LP) slabs -> pure VPU.
    mx = jnp.max(logits, axis=0)                       # (TM, LP)
    z = logits - mx                                    # (C, TM, LP)
    ez = jnp.exp(z)                                    # (C, TM, LP)
    sum_ez = jnp.sum(ez, axis=0)                       # (TM, LP)

    # Target-class selects via one-hot (no dynamic gather). Reusing ez avoids
    # a second exp per pixel (EUP is the next-binding slot on v7x).
    cls = lax.broadcasted_iota(jnp.int32, (c, tm, lp), 0)
    onehot = cls == tgt                                # (C, TM, LP) bool
    zt = jnp.sum(jnp.where(onehot, z, 0.0), axis=0)    # z at target
    ezt = jnp.sum(jnp.where(onehot, ez, 0.0), axis=0)  # exp(z) at target

    log_pt = zt - jnp.log(sum_ez)                      # log softmax @ target
    pt = ezt * pl.reciprocal(sum_ez, approx=True)      # softmax @ target

    # Focal loss: -(1 - p_t)^gamma * log(p_t), gamma=2, alpha=1.
    one_minus = 1.0 - pt
    focal = jnp.where(in_range, -(one_minus * one_minus) * log_pt, 0.0)

    # Edge-attention CE gate: max edge channel > 0.7 and non-ignore label.
    # Edge max / threshold compare stay in the edge's native dtype.
    edge_max = jnp.max(edge_ref[...], axis=0)          # (TM, LP)
    valid = (edge_max > EDGE_THRESH) & (tgt != IGNORE_INDEX) & in_range
    ce = jnp.where(valid, -log_pt, 0.0)

    acc_ref[0] += focal
    acc_ref[1] += ce
    acc_ref[2] += valid.astype(jnp.float32)


def loss_forward(segin, segmask, edgein, *, seg_weight=1.0, att_weight=1.0,
                 tile_pixels=32768):
    """Pallas implementation of Loss.forward.

    segin:   (N, 9, H, W)  float logits
    segmask: (N, H, W)     integer class targets in [0, 9) (255 = CE ignore)
    edgein:  (N, Ce, H, W) float edge map
    Returns {'seg_loss': scalar, 'att_loss': scalar}.
    """
    n, c, h, w = segin.shape
    assert c == CLASS_NUM
    ce_ch = edgein.shape[1]
    hw = h * w
    p_total = n * hw

    logits = segin.reshape(n, c, hw)
    targets = segmask.reshape(n, hw)          # native dtype; cast in-kernel
    edge = edgein.reshape(n, ce_ch, hw)

    # Pad the pixel axis only when H*W is not a multiple of 128 (rare); for
    # typical segmentation shapes this branch (and its HBM copies) is skipped.
    hw_pad = ((hw + 127) // 128) * 128
    if hw_pad != hw:
        logits = jnp.pad(logits, ((0, 0), (0, 0), (0, hw_pad - hw)))
        targets = jnp.pad(targets, ((0, 0), (0, hw_pad - hw)))
        edge = jnp.pad(edge, ((0, 0), (0, 0), (0, hw_pad - hw)))

    # Lane width (multiple of 128 dividing hw_pad) and sublane tile height.
    if hw_pad % 512 == 0:
        lp = 512
    elif hw_pad % 256 == 0:
        lp = 256
    else:
        lp = 128
    m = hw_pad // lp

    tm_want = max(1, int(tile_pixels) // lp)
    if m <= tm_want or m < 8:
        tm = m                                    # full extent
    else:
        tm = max(8, (min(tm_want, m) // 8) * 8)   # multiple of 8

    # Free row-major reshapes to class-major, lane-dense 2D pixel slabs.
    logits = logits.reshape(n, c, m, lp)
    targets = targets.reshape(n, m, lp)
    edge = edge.reshape(n, ce_ch, m, lp)

    n_tiles = pl.cdiv(m, tm)
    # Balanced split of the tile range over a leading "parallel" axis so both
    # v7x TensorCores stay busy even when N == 1 / odd. Fully-OOB half-tiles
    # are clamped to the last block and masked out by in_range in the kernel.
    half_tiles = pl.cdiv(n_tiles, 2)
    last_block = n_tiles - 1
    needs_clamp = 2 * half_tiles > n_tiles

    def tile_idx(hh, ii):
        t = hh * half_tiles + ii
        return jnp.minimum(t, last_block) if needs_clamp else t

    acc_shape = jax.ShapeDtypeStruct((2 * n, 3, tm, lp), jnp.float32)
    acc_spec = pl.BlockSpec((None, 3, tm, lp),
                            lambda hh, nn, ii: (hh * n + nn, 0, 0, 0))

    acc = pl.pallas_call(
        functools.partial(_loss_kernel, hw_valid=hw, half_tiles=half_tiles),
        out_shape=acc_shape,
        grid_spec=pltpu.PrefetchScalarGridSpec(
            num_scalar_prefetch=0,
            grid=(2, n, half_tiles),
            in_specs=[
                pl.BlockSpec((None, c, tm, lp),
                             lambda hh, nn, ii: (nn, 0, tile_idx(hh, ii), 0)),
                pl.BlockSpec((None, tm, lp),
                             lambda hh, nn, ii: (nn, tile_idx(hh, ii), 0)),
                pl.BlockSpec((None, ce_ch, tm, lp),
                             lambda hh, nn, ii: (nn, 0, tile_idx(hh, ii), 0)),
            ],
            out_specs=acc_spec,
        ),
        compiler_params=pltpu.CompilerParams(
            dimension_semantics=("parallel", "parallel", "arbitrary")),
    )(logits, targets, edge)

    # Final tiny reductions / weighting in plain JAX.
    focal_sum = jnp.sum(acc[:, 0])
    ce_sum = jnp.sum(acc[:, 1])
    ce_cnt = jnp.sum(acc[:, 2])

    seg_loss = seg_weight * (focal_sum / jnp.float32(p_total))   # mean over all pixels
    att_loss = att_weight * jnp.where(ce_cnt > 0,
                                      ce_sum / ce_cnt,            # mean over non-ignored
                                      jnp.float32(0.0))
    return {"seg_loss": seg_loss, "att_loss": att_loss}


if __name__ == "__main__":
    key = jax.random.PRNGKey(0)
    k1, k2, k3 = jax.random.split(key, 3)

    N, C, H, W = 2, CLASS_NUM, 16, 16
    CE = 2  # edge channels

    segin = jax.random.normal(k1, (N, C, H, W), dtype=jnp.float32)
    segmask = jax.random.randint(k2, (N, H, W), 0, CLASS_NUM, dtype=jnp.int32)
    edgein = jax.random.uniform(k3, (N, CE, H, W), dtype=jnp.float32)

    losses = jax.jit(loss_forward)(segin, segmask, edgein)
    jax.block_until_ready(losses)
    print("KERNEL_OK")
</pallas_src>

<mosaic_0001>
module attributes {stable_mosaic.version = 11 : i64} {
  func.func @_loss_kernel(%arg0: i32, %arg1: i32, %arg2: i32, %arg3: memref<1x9x1x256xf32, #tpu.memory_space<vmem>>, %arg4: memref<1x1x256xi32, #tpu.memory_space<vmem>>, %arg5: memref<1x2x1x256xf32, #tpu.memory_space<vmem>>, %arg6: memref<1x3x1x256xf32, #tpu.memory_space<vmem>>) attributes {dimension_semantics = [#tpu.dimension_semantics<parallel>, #tpu.dimension_semantics<parallel>, #tpu.dimension_semantics<arbitrary>], iteration_bounds = array<i64: 2, 2, 1>, scalar_prefetch = 0 : i64, scratch_operands = 0 : i64, tpu.core_type = #tpu.core_type<tc>, window_params = [{transform_indices = @transform_0, window_bounds = array<i64: 1, 9, 1, 256>}, {transform_indices = @transform_1, window_bounds = array<i64: 1, 1, 256>}, {transform_indices = @transform_2, window_bounds = array<i64: 1, 2, 1, 256>}, {transform_indices = @transform_3, window_bounds = array<i64: 1, 3, 1, 256>}]} {
    %c0_i32 = arith.constant 0 : i32
    %0 = arith.cmpi eq, %arg2, %c0_i32 : i32
    %1 = arith.extui %0 : i1 to i32
    %c0_i32_0 = arith.constant 0 : i32
    %2 = arith.cmpi ne, %1, %c0_i32_0 : i32
    scf.if %2 {
      %cst_47 = arith.constant 0.000000e+00 : f32
      %80 = vector.broadcast %cst_47 : f32 to vector<3x1x256xf32>
      %c0_48 = arith.constant 0 : index
      %c0_49 = arith.constant 0 : index
      %c0_50 = arith.constant 0 : index
      %c0_51 = arith.constant 0 : index
      %81 = vector.load %arg6[%c0_48, %c0_49, %c0_50, %c0_51] : memref<1x3x1x256xf32, #tpu.memory_space<vmem>>, vector<1x3x1x256xf32>
      %82 = vector.shape_cast %81 : vector<1x3x1x256xf32> to vector<3x1x256xf32>
      %83 = vector.shape_cast %80 : vector<3x1x256xf32> to vector<1x3x1x256xf32>
      tpu.vector_store %arg6[%c0_48, %c0_49, %c0_50, %c0_51], %83 {strides = array<i32>} : memref<1x3x1x256xf32, #tpu.memory_space<vmem>>, vector<1x3x1x256xf32>,
    } else {
    }
    %c0 = arith.constant 0 : index
    %c0_1 = arith.constant 0 : index
    %c0_2 = arith.constant 0 : index
    %c0_3 = arith.constant 0 : index
    %3 = vector.load %arg3[%c0, %c0_1, %c0_2, %c0_3] : memref<1x9x1x256xf32, #tpu.memory_space<vmem>>, vector<1x9x1x256xf32>
    %4 = vector.shape_cast %3 : vector<1x9x1x256xf32> to vector<9x1x256xf32>
    %c0_4 = arith.constant 0 : index
    %c0_5 = arith.constant 0 : index
    %c0_6 = arith.constant 0 : index
    %5 = vector.load %arg4[%c0_4, %c0_5, %c0_6] : memref<1x1x256xi32, #tpu.memory_space<vmem>>, vector<1x1x256xi32>
    %6 = vector.shape_cast %5 : vector<1x1x256xi32> to vector<1x256xi32>
    %c1_i32 = arith.constant 1 : i32
    %7 = arith.muli %arg0, %c1_i32 : i32
    %8 = arith.addi %7, %arg2 : i32
    %c1_i32_7 = arith.constant 1 : i32
    %9 = arith.muli %8, %c1_i32_7 : i32
    %10 = tpu.iota {dimensions = array<i32: 0>} : vector<1x256xi32>
    %11 = vector.broadcast %9 : i32 to vector<1x256xi32>
    %12 = arith.addi %11, %10 : vector<1x256xi32>
    %13 = tpu.iota {dimensions = array<i32: 1>} : vector<1x256xi32>
    %c256_i32 = arith.constant 256 : i32
    %14 = vector.broadcast %c256_i32 : i32 to vector<1x256xi32>
    %15 = arith.muli %12, %14 : vector<1x256xi32>
    %16 = arith.addi %15, %13 : vector<1x256xi32>
    %c256_i32_8 = arith.constant 256 : i32
    %17 = vector.broadcast %c256_i32_8 : i32 to vector<1x256xi32>
    %18 = arith.cmpi slt, %16, %17 : vector<1x256xi32>
    %cst = arith.constant dense<0xFF800000> : vector<1x256xf32>
    %19 = vector.multi_reduction <maximumf>, %4, %cst [0] : vector<9x1x256xf32> to vector<1x256xf32>
    %20 = vector.shape_cast %19 : vector<1x256xf32> to vector<1x1x256xf32>
    %21 = vector.broadcast %20 : vector<1x1x256xf32> to vector<9x1x256xf32>
    %22 = arith.subf %4, %21 : vector<9x1x256xf32>
    %23 = math.exp %22 : vector<9x1x256xf32>
    %cst_9 = arith.constant dense<0.000000e+00> : vector<1x256xf32>
    %24 = vector.multi_reduction <add>, %23, %cst_9 [0] : vector<9x1x256xf32> to vector<1x256xf32>
    %25 = tpu.iota {dimensions = array<i32: 0>} : vector<9x1x256xi32>
    %26 = vector.shape_cast %6 : vector<1x256xi32> to vector<1x1x256xi32>
    %27 = vector.broadcast %26 : vector<1x1x256xi32> to vector<9x1x256xi32>
    %28 = arith.cmpi eq, %25, %27 : vector<9x1x256xi32>
    %cst_10 = arith.constant 0.000000e+00 : f32
    %29 = vector.broadcast %cst_10 : f32 to vector<9x1x256xf32>
    %30 = arith.select %28, %22, %29 : vector<9x1x256xi1>, vector<9x1x256xf32>
    %cst_11 = arith.constant dense<0.000000e+00> : vector<1x256xf32>
    %31 = vector.multi_reduction <add>, %30, %cst_11 [0] : vector<9x1x256xf32> to vector<1x256xf32>
    %cst_12 = arith.constant 0.000000e+00 : f32
    %32 = vector.broadcast %cst_12 : f32 to vector<9x1x256xf32>
    %33 = arith.select %28, %23, %32 : vector<9x1x256xi1>, vector<9x1x256xf32>
    %cst_13 = arith.constant dense<0.000000e+00> : vector<1x256xf32>
    %34 = vector.multi_reduction <add>, %33, %cst_13 [0] : vector<9x1x256xf32> to vector<1x256xf32>
    %35 = math.log %24 : vector<1x256xf32>
    %36 = arith.subf %31, %35 : vector<1x256xf32>
    %37 = tpu.reciprocal %24 {approx = true} : vector<1x256xf32> -> vector<1x256xf32>
    %38 = arith.mulf %34, %37 : vector<1x256xf32>
    %cst_14 = arith.constant 1.000000e+00 : f32
    %39 = vector.broadcast %cst_14 : f32 to vector<1x256xf32>
    %40 = arith.subf %39, %38 : vector<1x256xf32>
    %41 = arith.mulf %40, %40 : vector<1x256xf32>
    %cst_15 = arith.constant 0.000000e+00 : f32
    %42 = vector.broadcast %cst_15 : f32 to vector<1x256xf32>
    %43 = arith.subf %42, %41 : vector<1x256xf32>
    %44 = arith.mulf %43, %36 : vector<1x256xf32>
    %cst_16 = arith.constant 0.000000e+00 : f32
    %45 = vector.broadcast %cst_16 : f32 to vector<1x256xf32>
    %46 = arith.select %18, %44, %45 : vector<1x256xi1>, vector<1x256xf32>
    %c0_17 = arith.constant 0 : index
    %c0_18 = arith.constant 0 : index
    %c0_19 = arith.constant 0 : index
    %c0_20 = arith.constant 0 : index
    %47 = vector.load %arg5[%c0_17, %c0_18, %c0_19, %c0_20] : memref<1x2x1x256xf32, #tpu.memory_space<vmem>>, vector<1x2x1x256xf32>
    %48 = vector.shape_cast %47 : vector<1x2x1x256xf32> to vector<2x1x256xf32>
    %cst_21 = arith.constant dense<0xFF800000> : vector<1x256xf32>
    %49 = vector.multi_reduction <maximumf>, %48, %cst_21 [0] : vector<2x1x256xf32> to vector<1x256xf32>
    %cst_22 = arith.constant 0.699999988 : f32
    %50 = vector.broadcast %cst_22 : f32 to vector<1x256xf32>
    %51 = arith.cmpf ogt, %49, %50 : vector<1x256xf32>
    %c255_i32 = arith.constant 255 : i32
    %52 = vector.broadcast %c255_i32 : i32 to vector<1x256xi32>
    %53 = arith.cmpi ne, %6, %52 : vector<1x256xi32>
    %54 = arith.andi %51, %53 : vector<1x256xi1>
    %55 = arith.andi %54, %18 : vector<1x256xi1>
    %cst_23 = arith.constant 0.000000e+00 : f32
    %56 = vector.broadcast %cst_23 : f32 to vector<1x256xf32>
    %57 = arith.subf %56, %36 : vector<1x256xf32>
    %cst_24 = arith.constant 0.000000e+00 : f32
    %58 = vector.broadcast %cst_24 : f32 to vector<1x256xf32>
    %59 = arith.select %55, %57, %58 : vector<1x256xi1>, vector<1x256xf32>
    %c0_25 = arith.constant 0 : index
    %c0_26 = arith.constant 0 : index
    %c0_27 = arith.constant 0 : index
    %c0_28 = arith.constant 0 : index
    %60 = vector.load %arg6[%c0_25, %c0_26, %c0_27, %c0_28] : memref<1x3x1x256xf32, #tpu.memory_space<vmem>>, vector<1x1x1x256xf32>
    %61 = vector.shape_cast %60 : vector<1x1x1x256xf32> to vector<1x256xf32>
    %62 = arith.addf %61, %46 : vector<1x256xf32>
    %c0_29 = arith.constant 0 : index
    %c0_30 = arith.constant 0 : index
    %c0_31 = arith.constant 0 : index
    %c0_32 = arith.constant 0 : index
    %63 = vector.load %arg6[%c0_29, %c0_30, %c0_31, %c0_32] : memref<1x3x1x256xf32, #tpu.memory_space<vmem>>, vector<1x1x1x256xf32>
    %64 = vector.shape_cast %63 : vector<1x1x1x256xf32> to vector<1x256xf32>
    %65 = vector.shape_cast %62 : vector<1x256xf32> to vector<1x1x1x256xf32>
    tpu.vector_store %arg6[%c0_29, %c0_30, %c0_31, %c0_32], %65 {strides = array<i32>} : memref<1x3x1x256xf32, #tpu.memory_space<vmem>>, vector<1x1x1x256xf32>,
    %c0_33 = arith.constant 0 : index
    %c1 = arith.constant 1 : index
    %c0_34 = arith.constant 0 : index
    %c0_35 = arith.constant 0 : index
    %66 = vector.load %arg6[%c0_33, %c1, %c0_34, %c0_35] : memref<1x3x1x256xf32, #tpu.memory_space<vmem>>, vector<1x1x1x256xf32>
    %67 = vector.shape_cast %66 : vector<1x1x1x256xf32> to vector<1x256xf32>
    %68 = arith.addf %67, %59 : vector<1x256xf32>
    %c0_36 = arith.constant 0 : index
    %c1_37 = arith.constant 1 : index
    %c0_38 = arith.constant 0 : index
    %c0_39 = arith.constant 0 : index
    %69 = vector.load %arg6[%c0_36, %c1_37, %c0_38, %c0_39] : memref<1x3x1x256xf32, #tpu.memory_space<vmem>>, vector<1x1x1x256xf32>
    %70 = vector.shape_cast %69 : vector<1x1x1x256xf32> to vector<1x256xf32>
    %71 = vector.shape_cast %68 : vector<1x256xf32> to vector<1x1x1x256xf32>
    tpu.vector_store %arg6[%c0_36, %c1_37, %c0_38, %c0_39], %71 {strides = array<i32>} : memref<1x3x1x256xf32, #tpu.memory_space<vmem>>, vector<1x1x1x256xf32>,
    %c0_40 = arith.constant 0 : index
    %c2 = arith.constant 2 : index
    %c0_41 = arith.constant 0 : index
    %c0_42 = arith.constant 0 : index
    %72 = vector.load %arg6[%c0_40, %c2, %c0_41, %c0_42] : memref<1x3x1x256xf32, #tpu.memory_space<vmem>>, vector<1x1x1x256xf32>
    %73 = vector.shape_cast %72 : vector<1x1x1x256xf32> to vector<1x256xf32>
    %74 = arith.extui %55 : vector<1x256xi1> to vector<1x256xi32>
    %75 = arith.sitofp %74 : vector<1x256xi32> to vector<1x256xf32>
    %76 = arith.addf %73, %75 : vector<1x256xf32>
    %c0_43 = arith.constant 0 : index
    %c2_44 = arith.constant 2 : index
    %c0_45 = arith.constant 0 : index
    %c0_46 = arith.constant 0 : index
    %77 = vector.load %arg6[%c0_43, %c2_44, %c0_45, %c0_46] : memref<1x3x1x256xf32, #tpu.memory_space<vmem>>, vector<1x1x1x256xf32>
    %78 = vector.shape_cast %77 : vector<1x1x1x256xf32> to vector<1x256xf32>
    %79 = vector.shape_cast %76 : vector<1x256xf32> to vector<1x1x1x256xf32>
    tpu.vector_store %arg6[%c0_43, %c2_44, %c0_45, %c0_46], %79 {strides = array<i32>} : memref<1x3x1x256xf32, #tpu.memory_space<vmem>>, vector<1x1x1x256xf32>,
    return
  }
  func.func @transform_0(%arg0: i32, %arg1: i32, %arg2: i32) -> (i32, i32, i32, i32) {
    %c1_i32 = arith.constant 1 : i32
    %0 = arith.muli %arg0, %c1_i32 : i32
    %1 = arith.addi %0, %arg2 : i32
    %c0_i32 = arith.constant 0 : i32
    %2 = arith.minsi %1, %c0_i32 : i32
    %c0_i32_0 = arith.constant 0 : i32
    %c0_i32_1 = arith.constant 0 : i32
    %c0_i32_2 = arith.constant 0 : i32
    return %arg1, %c0_i32_0, %2, %c0_i32_1 : i32, i32, i32, i32
  }
  func.func @transform_1(%arg0: i32, %arg1: i32, %arg2: i32) -> (i32, i32, i32) {
    %c1_i32 = arith.constant 1 : i32
    %0 = arith.muli %arg0, %c1_i32 : i32
    %1 = arith.addi %0, %arg2 : i32
    %c0_i32 = arith.constant 0 : i32
    %2 = arith.minsi %1, %c0_i32 : i32
    %c0_i32_0 = arith.constant 0 : i32
    %c0_i32_1 = arith.constant 0 : i32
    return %arg1, %2, %c0_i32_0 : i32, i32, i32
  }
  func.func @transform_2(%arg0: i32, %arg1: i32, %arg2: i32) -> (i32, i32, i32, i32) {
    %c1_i32 = arith.constant 1 : i32
    %0 = arith.muli %arg0, %c1_i32 : i32
    %1 = arith.addi %0, %arg2 : i32
    %c0_i32 = arith.constant 0 : i32
    %2 = arith.minsi %1, %c0_i32 : i32
    %c0_i32_0 = arith.constant 0 : i32
    %c0_i32_1 = arith.constant 0 : i32
    %c0_i32_2 = arith.constant 0 : i32
    return %arg1, %c0_i32_0, %2, %c0_i32_1 : i32, i32, i32, i32
  }
  func.func @transform_3(%arg0: i32, %arg1: i32, %arg2: i32) -> (i32, i32, i32, i32) {
    %c2_i32 = arith.constant 2 : i32
    %0 = arith.muli %arg0, %c2_i32 : i32
    %1 = arith.addi %0, %arg1 : i32
    %c0_i32 = arith.constant 0 : i32
    %c0_i32_0 = arith.constant 0 : i32
    %c0_i32_1 = arith.constant 0 : i32
    %c0_i32_2 = arith.constant 0 : i32
    return %1, %c0_i32, %c0_i32_0, %c0_i32_1 : i32, i32, i32, i32
  }
}

</mosaic_0001>

<llo_original>
// kernel: loss_forward.1
$region0: #{loss_forward.1}
  #allocation0 [shape = 'u32[]', space=smem, size = 0x4, offset = 0x4, fixed_abs, tag = 'smem constant byte address 0x4 - core index']
  #allocation1 [shape = 'u32[72,128]{1,0:T(1,128)}', space=vmem, size = 0x9000, scoped, tag = 'internal scratch']
  %s0 = inlined_call_operand.vmem [shape: f32[2,9,1,256], index: 0, kind: input, shape index: {}]
  %s1 = inlined_call_operand.vmem [shape: s32[2,1,256], index: 1, kind: input, shape index: {}]
  %s2 = inlined_call_operand.vmem [shape: f32[2,2,1,256], index: 2, kind: input, shape index: {}]
  %s3 = inlined_call_operand.vmem [shape: f32[4,3,1,256], index: 3, kind: output, shape index: {}]
  %s4 = sld [smem:[#allocation0]]
  $region49: #{loss_forward.1} parent=0
    _
  %s6 = ssub.s32 1, %s4
  %s7 = scalar_select 0, %s6, %s4
  loop: start=0, step=1, limit=6
  $region2: #{loss_forward.1} parent=0 // loop_pre_header
    _
  $region3: #{loss_forward.1} parent=0 // loop_header
    %s9 = sphi 0, %s13
    %p10 = scmp.ge.s32.totalorder %s9, 6
    %s16 = sphi 0, %s35
    %s17 = sphi 0, %s31
    %s18 = sphi 0, %s27
    %s19 = sphi 0, %s16
    %s20 = sphi 0, %s17
    %s21 = sphi 0, %s18
    %s22 = sphi 0, %s19
    %s23 = sphi 0, %s20
    %s24 = sphi 0, %s21
    %s46 = sphi 0, %s48
    %s49 = sphi 0, %s46
    %s50 = sphi 0, %s49
    %s66 = sphi 0, %s50
    %s80 = sphi 0, %s82
    %s83 = sphi 0, %s80
    %s84 = sphi 0, %s83
    %s100 = sphi 0, %s84
    %s114 = sphi 0, %s116
    %s117 = sphi 0, %s114
    %s118 = sphi 0, %s117
    %s134 = sphi 0, %s118
    %s144 = sphi 0, %s146
    %s147 = sphi 0, %s144
    %s148 = sphi 0, %s147
    %s164 = sphi 0, %s148
  $region4: #{loss_forward.1} parent=0 // loop_header_branch
    %12 = sbr.rel (%p10) target = $region8
  $region5: #{loss_forward.1} parent=0 // loop_body
    %s14 = ssub.s32 %s9, 1
    %s15 = ssub.s32 %s9, 2
    %s25 = sadd.s32 1, %s18
    %p26 = scmp.ge.s32.totalorder %s25, 1
    %s27 = scalar_select %p26, 0, %s25
    %s28 = sadd.s32 1, %s17
    %s29 = scalar_select %p26, %s28, %s17
    %p30 = scmp.ge.s32.totalorder %s29, 2
    %s31 = scalar_select %p30, 0, %s29
    %s32 = sadd.s32 1, %s16
    %s33 = scalar_select %p30, %s32, %s16
    %p34 = scmp.ge.s32.totalorder %s33, 2
    %s35 = scalar_select %p34, 0, %s33
    %s36 = sadd.s32 %s16, %s18
    %p37 = scmp.lt.s32.totalorder %s36, 0
    %s38 = scalar_select %p37, %s36, 0
    %s39 = sadd.s32 %s35, %s27
    %p40 = scmp.lt.s32.totalorder %s39, 0
    %s41 = scalar_select %p40, %s39, 0
    %s42 = ssub.s32 %s17, %s31
    %s43 = ssub.s32 %s38, %s41
    %s44 = sor.u32 %s42, %s43
    %p45 = scmp.eq.s32.totalorder %s44, 0
    %s47 = sadd.s32 %s46, 1
    %s48 = scalar_select %p45, %s46, %s47
    %p51 = pneg %p45
    %p52 = scmp.eq.s32.totalorder %s9, 3
    %p53 = por %p51, %p52
    %p54 = scmp.ne.s32.totalorder %s46, %s49
    %p55 = scmp.eq.s32.totalorder %s9, 0
    %p56 = por %p54, %p55
    %p57 = scmp.ne.s32.totalorder %s46, %s49
    %p58 = scmp.eq.s32.totalorder %s14, 3
    %p59 = por %p57, %p58
    %p60 = scmp.ne.s32.totalorder %s49, %s50
    %p61 = scmp.eq.s32.totalorder %s14, 0
    %p62 = por %p60, %p61
    %p63 = scmp.ne.s32.totalorder %s49, %s50
    %p64 = scmp.eq.s32.totalorder %s15, 3
    %p65 = por %p63, %p64
    %p67 = scmp.ne.s32.totalorder %s50, %s66
    %p68 = scmp.eq.s32.totalorder %s15, 0
    %p69 = por %p67, %p68
    %s70 = sadd.s32 %s16, %s18
    %p71 = scmp.lt.s32.totalorder %s70, 0
    %s72 = scalar_select %p71, %s70, 0
    %s73 = sadd.s32 %s35, %s27
    %p74 = scmp.lt.s32.totalorder %s73, 0
    %s75 = scalar_select %p74, %s73, 0
    %s76 = ssub.s32 %s17, %s31
    %s77 = ssub.s32 %s72, %s75
    %s78 = sor.u32 %s76, %s77
    %p79 = scmp.eq.s32.totalorder %s78, 0
    %s81 = sadd.s32 %s80, 1
    %s82 = scalar_select %p79, %s80, %s81
    %p85 = pneg %p79
    %p86 = scmp.eq.s32.totalorder %s9, 3
    %p87 = por %p85, %p86
    %p88 = scmp.ne.s32.totalorder %s80, %s83
    %p89 = scmp.eq.s32.totalorder %s9, 0
    %p90 = por %p88, %p89
    %p91 = scmp.ne.s32.totalorder %s80, %s83
    %p92 = scmp.eq.s32.totalorder %s14, 3
    %p93 = por %p91, %p92
    %p94 = scmp.ne.s32.totalorder %s83, %s84
    %p95 = scmp.eq.s32.totalorder %s14, 0
    %p96 = por %p94, %p95
    %p97 = scmp.ne.s32.totalorder %s83, %s84
    %p98 = scmp.eq.s32.totalorder %s15, 3
    %p99 = por %p97, %p98
    %p101 = scmp.ne.s32.totalorder %s84, %s100
    %p102 = scmp.eq.s32.totalorder %s15, 0
    %p103 = por %p101, %p102
    %s104 = sadd.s32 %s16, %s18
    %p105 = scmp.lt.s32.totalorder %s104, 0
    %s106 = scalar_select %p105, %s104, 0
    %s107 = sadd.s32 %s35, %s27
    %p108 = scmp.lt.s32.totalorder %s107, 0
    %s109 = scalar_select %p108, %s107, 0
    %s110 = ssub.s32 %s17, %s31
    %s111 = ssub.s32 %s106, %s109
    %s112 = sor.u32 %s110, %s111
    %p113 = scmp.eq.s32.totalorder %s112, 0
    %s115 = sadd.s32 %s114, 1
    %s116 = scalar_select %p113, %s114, %s115
    %p119 = pneg %p113
    %p120 = scmp.eq.s32.totalorder %s9, 3
    %p121 = por %p119, %p120
    %p122 = scmp.ne.s32.totalorder %s114, %s117
    %p123 = scmp.eq.s32.totalorder %s9, 0
    %p124 = por %p122, %p123
    %p125 = scmp.ne.s32.totalorder %s114, %s117
    %p126 = scmp.eq.s32.totalorder %s14, 3
    %p127 = por %p125, %p126
    %p128 = scmp.ne.s32.totalorder %s117, %s118
    %p129 = scmp.eq.s32.totalorder %s14, 0
    %p130 = por %p128, %p129
    %p131 = scmp.ne.s32.totalorder %s117, %s118
    %p132 = scmp.eq.s32.totalorder %s15, 3
    %p133 = por %p131, %p132
    %p135 = scmp.ne.s32.totalorder %s118, %s134
    %p136 = scmp.eq.s32.totalorder %s15, 0
    %p137 = por %p135, %p136
    %s138 = smul.u32 %s16, 2
    %s139 = sadd.s32 %s138, %s17
    %s140 = smul.u32 %s35, 2
    %s141 = sadd.s32 %s140, %s31
    %s142 = ssub.s32 %s139, %s141
    %p143 = scmp.eq.s32.totalorder %s142, 0
    %s145 = sadd.s32 %s144, 1
    %s146 = scalar_select %p143, %s144, %s145
    %p149 = pneg %p143
    %p150 = scmp.eq.s32.totalorder %s9, 3
    %p151 = por %p149, %p150
    %p152 = scmp.ne.s32.totalorder %s144, %s147
    %p153 = scmp.eq.s32.totalorder %s9, 0
    %p154 = por %p152, %p153
    %p155 = scmp.ne.s32.totalorder %s144, %s147
    %p156 = scmp.eq.s32.totalorder %s14, 3
    %p157 = por %p155, %p156
    %p158 = scmp.ne.s32.totalorder %s147, %s148
    %p159 = scmp.eq.s32.totalorder %s14, 0
    %p160 = por %p158, %p159
    %p161 = scmp.ne.s32.totalorder %s147, %s148
    %p162 = scmp.eq.s32.totalorder %s15, 3
    %p163 = por %p161, %p162
    %p165 = scmp.ne.s32.totalorder %s148, %s164
    %p166 = scmp.eq.s32.totalorder %s15, 0
    %p167 = por %p165, %p166
    %p168 = scmp.le.s32.totalorder 1, %s9
    %p169 = scmp.lt.s32.totalorder %s9, 5
    %p170 = pnand %p168, %p169
    %p171 = pneg %p170
    // Predicated region
    $region9: #{loss_forward.1} parent=5 // pred_check
      _
    $region10: #{loss_forward.1} parent=5 // pred_check_branch
      %173 = sbr.rel (%p170) target = $region12
    $region11: #{loss_forward.1} parent=5 // pred_region
      %s174 = ssub.s32 %s9, 1
    $region12: #{loss_forward.1} parent=5 // pred_fallthru
      _
    %p175 = scmp.lt.s32.totalorder %s9, 4
    // Predicated region
    $region13: #{loss_forward.1} parent=5 // pred_check
      %p176 = pneg %p175
    $region14: #{loss_forward.1} parent=5 // pred_check_branch
      %178 = sbr.rel (%p176) target = $region16
    $region15: #{loss_forward.1} parent=5 // pred_region
      // Predicated region
      $region17: #{loss_forward.1} parent=15 // pred_check
        %p179 = pneg %p56
      $region18: #{loss_forward.1} parent=15 // pred_check_branch
        %181 = sbr.rel (%p179) target = $region20
      $region19: #{loss_forward.1} parent=15 // pred_region
        %s182 = sadd.s32 %s16, %s18
        %p183 = scmp.lt.s32.totalorder %s182, 0
        %s184 = scalar_select %p183, %s182, 0
        %p185 = scmp.lt.s32.totalorder %s17, 1
        %s186 = scalar_select %p185, %s17, 1
        %p187 = scmp.lt.s32.totalorder %s184, 0
        %s188 = scalar_select %p187, %s184, 0
        %s189 = smul.addr %s188, 2
        %s190 = smul.addr %s186, 18
        %s191 = sadd.s32 %s189, %s190
        %s192 = scalar_lea.vmem %s0, %s191
        %s193 = sadd.s32 %s16, %s18
        %p194 = scmp.lt.s32.totalorder %s193, 0
        %s195 = scalar_select %p194, %s193, 0
      $region20: #{loss_forward.1} parent=15 // pred_fallthru
        _
      // Predicated region
      $region21: #{loss_forward.1} parent=15 // pred_check
        %p196 = pneg %p90
      $region22: #{loss_forward.1} parent=15 // pred_check_branch
        %198 = sbr.rel (%p196) target = $region24
      $region23: #{loss_forward.1} parent=15 // pred_region
        %s199 = sadd.s32 %s16, %s18
        %p200 = scmp.lt.s32.totalorder %s199, 0
        %s201 = scalar_select %p200, %s199, 0
        %p202 = scmp.lt.s32.totalorder %s17, 1
        %s203 = scalar_select %p202, %s17, 1
        %p204 = scmp.lt.s32.totalorder %s201, 0
        %s205 = scalar_select %p204, %s201, 0
        %s206 = smul.addr %s205, 2
        %s207 = smul.addr %s203, 2
        %s208 = sadd.s32 %s206, %s207
        %s209 = scalar_lea.vmem %s1, %s208
        %s210 = sadd.s32 %s16, %s18
        %p211 = scmp.lt.s32.totalorder %s210, 0
        %s212 = scalar_select %p211, %s210, 0
      $region24: #{loss_forward.1} parent=15 // pred_fallthru
        _
      // Predicated region
      $region25: #{loss_forward.1} parent=15 // pred_check
        %p213 = pneg %p124
      $region26: #{loss_forward.1} parent=15 // pred_check_branch
        %215 = sbr.rel (%p213) target = $region28
      $region27: #{loss_forward.1} parent=15 // pred_region
        %s216 = sadd.s32 %s16, %s18
        %p217 = scmp.lt.s32.totalorder %s216, 0
        %s218 = scalar_select %p217, %s216, 0
        %p219 = scmp.lt.s32.totalorder %s17, 1
        %s220 = scalar_select %p219, %s17, 1
        %p221 = scmp.lt.s32.totalorder %s218, 0
        %s222 = scalar_select %p221, %s218, 0
        %s223 = smul.addr %s222, 2
        %s224 = smul.addr %s220, 4
        %s225 = sadd.s32 %s223, %s224
        %s226 = scalar_lea.vmem %s2, %s225
        %s227 = sadd.s32 %s16, %s18
        %p228 = scmp.lt.s32.totalorder %s227, 0
        %s229 = scalar_select %p228, %s227, 0
      $region28: #{loss_forward.1} parent=15 // pred_fallthru
        _
    $region16: #{loss_forward.1} parent=5 // pred_fallthru
      _
    %p230 = scmp.le.s32.totalorder 1, %s9
    %p231 = scmp.lt.s32.totalorder %s9, 5
    %p232 = pnand %p230, %p231
    %p233 = pneg %p232
    // Predicated region
    $region29: #{loss_forward.1} parent=5 // pred_check
      _
    $region30: #{loss_forward.1} parent=5 // pred_check_branch
      %235 = sbr.rel (%p232) target = $region32
    $region31: #{loss_forward.1} parent=5 // pred_region
      %s236 = ssub.s32 %s9, 1
      %s237 = sadd.s32 %s19, %s21
      %p238 = scmp.lt.s32.totalorder %s237, 0
      %s239 = scalar_select %p238, %s237, 0
      %p240 = scmp.lt.s32.totalorder %s20, 1
      %s241 = scalar_select %p240, %s20, 1
      %p242 = scmp.lt.s32.totalorder %s239, 0
      %s243 = scalar_select %p242, %s239, 0
      %s244 = smul.addr %s243, 2
      %s245 = smul.addr %s241, 18
      %s246 = sadd.s32 %s244, %s245
      %s247 = scalar_lea.vmem %s0, %s246
      %p248 = pneg %p62
      %p249 = pneg %p59
      %s250 = sadd.s32 %s19, %s21
      %p251 = scmp.lt.s32.totalorder %s250, 0
      %s252 = scalar_select %p251, %s250, 0
      %p253 = scmp.lt.s32.totalorder %s20, 1
      %s254 = scalar_select %p253, %s20, 1
      %p255 = scmp.lt.s32.totalorder %s252, 0
      %s256 = scalar_select %p255, %s252, 0
      %s257 = smul.addr %s256, 2
      %s258 = smul.addr %s254, 2
      %s259 = sadd.s32 %s257, %s258
      %s260 = scalar_lea.vmem %s1, %s259
      %p261 = pneg %p96
      %p262 = pneg %p93
      %s263 = sadd.s32 %s19, %s21
      %p264 = scmp.lt.s32.totalorder %s263, 0
      %s265 = scalar_select %p264, %s263, 0
      %p266 = scmp.lt.s32.totalorder %s20, 1
      %s267 = scalar_select %p266, %s20, 1
      %p268 = scmp.lt.s32.totalorder %s265, 0
      %s269 = scalar_select %p268, %s265, 0
      %s270 = smul.addr %s269, 2
      %s271 = smul.addr %s267, 4
      %s272 = sadd.s32 %s270, %s271
      %s273 = scalar_lea.vmem %s2, %s272
      %p274 = pneg %p130
      %p275 = pneg %p127
      %p276 = pneg %p160
      %p277 = pneg %p157
      %s278 = smul.u32 %s19, 2
      %s279 = sadd.s32 %s278, %s20
      %p280 = scmp.lt.s32.totalorder %s279, 3
      %s281 = scalar_select %p280, %s279, 3
      %s282 = smul.addr %s281, 6
      %s283 = scalar_lea.vmem %s3, %s282
      %s284 = sadd.s32 %s19, %s21
      %p285 = scmp.lt.s32.totalorder %s284, 0
      %s286 = scalar_select %p285, %s284, 0
      %p287 = scmp.lt.s32.totalorder %s20, 1
      %s288 = scalar_select %p287, %s20, 1
      %p289 = scmp.lt.s32.totalorder %s286, 0
      %s290 = scalar_select %p289, %s286, 0
      %s291 = smul.addr %s290, 2
      %s292 = smul.addr %s288, 18
      %s293 = sadd.s32 %s291, %s292
      %s294 = scalar_lea.vmem %s0, %s293
      %s295 = sadd.s32 %s19, %s21
      %p296 = scmp.lt.s32.totalorder %s295, 0
      %s297 = scalar_select %p296, %s295, 0
      %s298 = sadd.s32 %s19, %s21
      %p299 = scmp.lt.s32.totalorder %s298, 0
      %s300 = scalar_select %p299, %s298, 0
      %p301 = scmp.lt.s32.totalorder %s20, 1
      %s302 = scalar_select %p301, %s20, 1
      %p303 = scmp.lt.s32.totalorder %s300, 0
      %s304 = scalar_select %p303, %s300, 0
      %s305 = smul.addr %s304, 2
      %s306 = smul.addr %s302, 2
      %s307 = sadd.s32 %s305, %s306
      %s308 = scalar_lea.vmem %s1, %s307
      %s309 = sadd.s32 %s19, %s21
      %p310 = scmp.lt.s32.totalorder %s309, 0
      %s311 = scalar_select %p310, %s309, 0
      %s312 = sadd.s32 %s19, %s21
      %p313 = scmp.lt.s32.totalorder %s312, 0
      %s314 = scalar_select %p313, %s312, 0
      %p315 = scmp.lt.s32.totalorder %s20, 1
      %s316 = scalar_select %p315, %s20, 1
      %p317 = scmp.lt.s32.totalorder %s314, 0
      %s318 = scalar_select %p317, %s314, 0
      %s319 = smul.addr %s318, 2
      %s320 = smul.addr %s316, 4
      %s321 = sadd.s32 %s319, %s320
      %s322 = scalar_lea.vmem %s2, %s321
      %s323 = sadd.s32 %s19, %s21
      %p324 = scmp.lt.s32.totalorder %s323, 0
      %s325 = scalar_select %p324, %s323, 0
      %s326 = smul.u32 %s19, 2
      %s327 = sadd.s32 %s326, %s20
      %p328 = scmp.lt.s32.totalorder %s327, 3
      %s329 = scalar_select %p328, %s327, 3
      %s330 = smul.addr %s329, 6
      %s331 = scalar_lea.vmem %s3, %s330
      %s332 = smul.u32 %s19, 2
      %s333 = sadd.s32 %s332, %s20
      %p334 = scmp.eq.s32.totalorder %s21, 0
      // Predicated region
      $region33: #{loss_forward.1} parent=31 // pred_check
        %p335 = pneg %p334
      $region34: #{loss_forward.1} parent=31 // pred_check_branch
        %337 = sbr.rel (%p335) target = $region36
      $region35: #{loss_forward.1} parent=31 // pred_region
        %v338 = vlaneseq
        %vm339 = vcmp.ge.s32.totalorder %v338, 0
        %vm340 = vcmp.lt.s32.totalorder %v338, 256
        %vm341 = vmand %vm339, %vm340
        %342 = vst.msk [vmem:[%s331] sm:$0x3] %vm341, 0.0
        %343 = vst.msk [vmem:[%s331 + $0x2] sm:$0x3] %vm341, 0.0
        %344 = vst.msk [vmem:[%s331 + $0x4] sm:$0x3] %vm341, 0.0
      $region36: #{loss_forward.1} parent=31 // pred_fallthru
        _
      %v345 = vld [vmem:[%s294] sm:$0x3]
      %v346 = vld [vmem:[%s294 + $0x2] sm:$0x3]
      %v347 = vld [vmem:[%s294 + $0x4] sm:$0x3]
      %v348 = vld [vmem:[%s294 + $0x6] sm:$0x3]
      %v349 = vld [vmem:[%s294 + $0x8] sm:$0x3]
      %v350 = vld [vmem:[%s294 + $0xa] sm:$0x3]
      %v351 = vld [vmem:[%s294 + $0xc] sm:$0x3]
      %v352 = vld [vmem:[%s294 + $0xe] sm:$0x3]
      %v353 = vld [vmem:[%s294 + $0x10] sm:$0x3]
      %v354 = vld [vmem:[%s308] sm:$0x3]
      %s355 = sadd.s32 %s19, %s21
      %v356 = vlaneseq
      %v357 = vshrl.u32 %v356, 7
      %v358 = vstv %s355
      %v359 = vadd.s32 %v358, %v357
      %v360 = vlaneseq
      %v361 = vand.u32 %v360, 127
      %v362 = vadd.s32 %v361, 128
      %v363 = vmul.u32 %v359, 256
      %v364 = vadd.s32 %v363, %v361
      %v365 = vadd.s32 %v363, %v362
      %vm366 = vcmp.lt.s32.totalorder %v364, 256
      %vm367 = vcmp.lt.s32.totalorder %v365, 256
      %v368 = vlaneseq
      %vm369 = vcmp.ge.s32.totalorder %v368, 0
      %vm370 = vcmp.lt.s32.totalorder %v368, 256
      %vm371 = vmand %vm369, %vm370
      %v372 = vsel %vm371, %v345, -inf
      %v373 = vsel %vm371, %v346, -inf
      %v374 = vsel %vm371, %v347, -inf
      %v375 = vsel %vm371, %v348, -inf
      %v376 = vsel %vm371, %v349, -inf
      %v377 = vmax.f32 %v372, %v376
      %v378 = vsel %vm371, %v350, -inf
      %v379 = vmax.f32 %v373, %v378
      %v380 = vsel %vm371, %v351, -inf
      %v381 = vmax.f32 %v374, %v380
      %v382 = vsel %vm371, %v352, -inf
      %v383 = vmax.f32 %v375, %v382
      %v384 = vsel %vm371, %v353, -inf
      %v385 = vmax.f32 %v377, %v384
      %v386 = vmax.f32 %v385, %v379
      %v387 = vmax.f32 %v381, %v383
      %v388 = vmax.f32 %v386, %v387
      %v389 = vsub.f32 %v345, %v388
      %v390 = vsub.f32 %v346, %v388
      %v391 = vsub.f32 %v347, %v388
      %v392 = vsub.f32 %v348, %v388
      %v393 = vsub.f32 %v349, %v388
      %v394 = vsub.f32 %v350, %v388
      %v395 = vsub.f32 %v351, %v388
      %v396 = vsub.f32 %v352, %v388
      %v397 = vsub.f32 %v353, %v388
      %v398 = vmul.f32 %v389, 1.442695
      %v399 = vpow.pop %v398
      %v400 = vmul.f32 %v390, 1.442695
      %v401 = vpow.pop %v400
      %v402 = vmul.f32 %v391, 1.442695
      %v403 = vpow.pop %v402
      %v404 = vmul.f32 %v392, 1.442695
      %v405 = vpow.pop %v404
      %v406 = vmul.f32 %v393, 1.442695
      %v407 = vpow.pop %v406
      %v408 = vmul.f32 %v394, 1.442695
      %v409 = vpow.pop %v408
      %v410 = vmul.f32 %v395, 1.442695
      %v411 = vpow.pop %v410
      %v412 = vmul.f32 %v396, 1.442695
      %v413 = vpow.pop %v412
      %v414 = vmul.f32 %v397, 1.442695
      %v415 = vpow.pop %v414
      %v425 = vperm.slane %v399, 0
      %v426 = vperm.slane %v399, 1
      %v427 = vperm.slane %v401, 0
      %v428 = vperm.slane %v401, 1
      %v429 = vperm.slane %v403, 0
      %v430 = vperm.slane %v403, 1
      %v431 = vperm.slane %v405, 0
      %v432 = vperm.slane %v405, 1
      %v433 = vperm.slane %v407, 0
      %v434 = vperm.slane %v407, 1
      %v435 = vperm.slane %v409, 0
      %v436 = vperm.slane %v409, 1
      %v437 = vperm.slane %v411, 0
      %v438 = vperm.slane %v411, 1
      %v439 = vperm.slane %v413, 0
      %v440 = vperm.slane %v413, 1
      %v441 = vperm.slane %v415, 0
      %v442 = vperm.slane %v415, 1
      %vm461 = vcmask 1040384
      %v462 = vsel %vm461, %v425, 0.0
      %v463 = vsel %vm461, %v427, 0.0
      %v464 = vadd.f32 %v462, %v463
      %v465 = vsel %vm461, %v429, 0.0
      %v466 = vadd.f32 %v464, %v465
      %v467 = vsel %vm461, %v431, 0.0
      %v468 = vadd.f32 %v466, %v467
      %v469 = vsel %vm461, %v433, 0.0
      %v470 = vadd.f32 %v468, %v469
      %v471 = vsel %vm461, %v435, 0.0
      %v472 = vadd.f32 %v470, %v471
      %v473 = vsel %vm461, %v437, 0.0
      %v474 = vadd.f32 %v472, %v473
      %v475 = vsel %vm461, %v439, 0.0
      %v476 = vadd.f32 %v474, %v475
      %v477 = vsel %vm461, %v441, 0.0
      %v478 = vadd.f32 %v476, %v477
      %v479 = vsel %vm461, %v426, 0.0
      %v480 = vsel %vm461, %v428, 0.0
      %v481 = vadd.f32 %v479, %v480
      %v482 = vsel %vm461, %v430, 0.0
      %v483 = vadd.f32 %v481, %v482
      %v484 = vsel %vm461, %v432, 0.0
      %v485 = vadd.f32 %v483, %v484
      %v486 = vsel %vm461, %v434, 0.0
      %v487 = vadd.f32 %v485, %v486
      %v488 = vsel %vm461, %v436, 0.0
      %v489 = vadd.f32 %v487, %v488
      %v490 = vsel %vm461, %v438, 0.0
      %v491 = vadd.f32 %v489, %v490
      %v492 = vsel %vm461, %v440, 0.0
      %v493 = vadd.f32 %v491, %v492
      %v494 = vsel %vm461, %v442, 0.0
      %v495 = vadd.f32 %v493, %v494
      %vm496 = vcmp.eq.s32.totalorder %v354, 0
      %vm497 = vcmp.eq.s32.totalorder %v354, 1
      %vm498 = vcmp.eq.s32.totalorder %v354, 2
      %vm499 = vcmp.eq.s32.totalorder %v354, 3
      %vm500 = vcmp.eq.s32.totalorder %v354, 4
      %vm501 = vcmp.eq.s32.totalorder %v354, 5
      %vm502 = vcmp.eq.s32.totalorder %v354, 6
      %vm503 = vcmp.eq.s32.totalorder %v354, 7
      %vm504 = vcmp.eq.s32.totalorder %v354, 8
      %v505 = vsel %vm496, %v389, 0.0
      %v506 = vsel %vm497, %v390, 0.0
      %v507 = vsel %vm498, %v391, 0.0
      %v508 = vsel %vm499, %v392, 0.0
      %v509 = vsel %vm500, %v393, 0.0
      %v510 = vsel %vm501, %v394, 0.0
      %v511 = vsel %vm502, %v395, 0.0
      %v512 = vsel %vm503, %v396, 0.0
      %v513 = vsel %vm504, %v397, 0.0
      %v523 = vperm.slane %v505, 0
      %v524 = vperm.slane %v505, 1
      %v525 = vperm.slane %v506, 0
      %v526 = vperm.slane %v506, 1
      %v527 = vperm.slane %v507, 0
      %v528 = vperm.slane %v507, 1
      %v529 = vperm.slane %v508, 0
      %v530 = vperm.slane %v508, 1
      %v531 = vperm.slane %v509, 0
      %v532 = vperm.slane %v509, 1
      %v533 = vperm.slane %v510, 0
      %v534 = vperm.slane %v510, 1
      %v535 = vperm.slane %v511, 0
      %v536 = vperm.slane %v511, 1
      %v537 = vperm.slane %v512, 0
      %v538 = vperm.slane %v512, 1
      %v539 = vperm.slane %v513, 0
      %v540 = vperm.slane %v513, 1
      %v559 = vsel %vm461, %v523, 0.0
      %v560 = vsel %vm461, %v525, 0.0
      %v561 = vadd.f32 %v559, %v560
      %v562 = vsel %vm461, %v527, 0.0
      %v563 = vadd.f32 %v561, %v562
      %v564 = vsel %vm461, %v529, 0.0
      %v565 = vadd.f32 %v563, %v564
      %v566 = vsel %vm461, %v531, 0.0
      %v567 = vadd.f32 %v565, %v566
      %v568 = vsel %vm461, %v533, 0.0
      %v569 = vadd.f32 %v567, %v568
      %v570 = vsel %vm461, %v535, 0.0
      %v571 = vadd.f32 %v569, %v570
      %v572 = vsel %vm461, %v537, 0.0
      %v573 = vadd.f32 %v571, %v572
      %v574 = vsel %vm461, %v539, 0.0
      %v575 = vadd.f32 %v573, %v574
      %v576 = vsel %vm461, %v524, 0.0
      %v577 = vsel %vm461, %v526, 0.0
      %v578 = vadd.f32 %v576, %v577
      %v579 = vsel %vm461, %v528, 0.0
      %v580 = vadd.f32 %v578, %v579
      %v581 = vsel %vm461, %v530, 0.0
      %v582 = vadd.f32 %v580, %v581
      %v583 = vsel %vm461, %v532, 0.0
      %v584 = vadd.f32 %v582, %v583
      %v585 = vsel %vm461, %v534, 0.0
      %v586 = vadd.f32 %v584, %v585
      %v587 = vsel %vm461, %v536, 0.0
      %v588 = vadd.f32 %v586, %v587
      %v589 = vsel %vm461, %v538, 0.0
      %v590 = vadd.f32 %v588, %v589
      %v591 = vsel %vm461, %v540, 0.0
      %v592 = vadd.f32 %v590, %v591
      %v593 = vsel %vm496, %v399, 0.0
      %v594 = vsel %vm497, %v401, 0.0
      %v595 = vsel %vm498, %v403, 0.0
      %v596 = vsel %vm499, %v405, 0.0
      %v597 = vsel %vm500, %v407, 0.0
      %v598 = vsel %vm501, %v409, 0.0
      %v599 = vsel %vm502, %v411, 0.0
      %v600 = vsel %vm503, %v413, 0.0
      %v601 = vsel %vm504, %v415, 0.0
      %v611 = vperm.slane %v593, 0
      %v612 = vperm.slane %v593, 1
      %v613 = vperm.slane %v594, 0
      %v614 = vperm.slane %v594, 1
      %v615 = vperm.slane %v595, 0
      %v616 = vperm.slane %v595, 1
      %v617 = vperm.slane %v596, 0
      %v618 = vperm.slane %v596, 1
      %v619 = vperm.slane %v597, 0
      %v620 = vperm.slane %v597, 1
      %v621 = vperm.slane %v598, 0
      %v622 = vperm.slane %v598, 1
      %v623 = vperm.slane %v599, 0
      %v624 = vperm.slane %v599, 1
      %v625 = vperm.slane %v600, 0
      %v626 = vperm.slane %v600, 1
      %v627 = vperm.slane %v601, 0
      %v628 = vperm.slane %v601, 1
      %v647 = vsel %vm461, %v611, 0.0
      %v648 = vsel %vm461, %v613, 0.0
      %v649 = vadd.f32 %v647, %v648
      %v650 = vsel %vm461, %v615, 0.0
      %v651 = vadd.f32 %v649, %v650
      %v652 = vsel %vm461, %v617, 0.0
      %v653 = vadd.f32 %v651, %v652
      %v654 = vsel %vm461, %v619, 0.0
      %v655 = vadd.f32 %v653, %v654
      %v656 = vsel %vm461, %v621, 0.0
      %v657 = vadd.f32 %v655, %v656
      %v658 = vsel %vm461, %v623, 0.0
      %v659 = vadd.f32 %v657, %v658
      %v660 = vsel %vm461, %v625, 0.0
      %v661 = vadd.f32 %v659, %v660
      %v662 = vsel %vm461, %v627, 0.0
      %v663 = vadd.f32 %v661, %v662
      %v664 = vsel %vm461, %v612, 0.0
      %v665 = vsel %vm461, %v614, 0.0
      %v666 = vadd.f32 %v664, %v665
      %v667 = vsel %vm461, %v616, 0.0
      %v668 = vadd.f32 %v666, %v667
      %v669 = vsel %vm461, %v618, 0.0
      %v670 = vadd.f32 %v668, %v669
      %v671 = vsel %vm461, %v620, 0.0
      %v672 = vadd.f32 %v670, %v671
      %v673 = vsel %vm461, %v622, 0.0
      %v674 = vadd.f32 %v672, %v673
      %v675 = vsel %vm461, %v624, 0.0
      %v676 = vadd.f32 %v674, %v675
      %v677 = vsel %vm461, %v626, 0.0
      %v678 = vadd.f32 %v676, %v677
      %v679 = vsel %vm461, %v628, 0.0
      %v680 = vadd.f32 %v678, %v679
      %v681 = vlog2.pop %v478
      %v682 = vmul.f32 %v681, 0.6931472
      %v683 = vlog2.pop %v495
      %v684 = vmul.f32 %v683, 0.6931472
      %v685 = vsub.f32 %v575, %v682
      %v686 = vsub.f32 %v592, %v684
      %v687 = vrcp.pop %v478
      %v688 = vrcp.pop %v495
      %v689 = vmul.f32 %v663, %v687
      %v690 = vmul.f32 %v680, %v688
      %v691 = vsub.f32 1.0, %v689
      %v692 = vsub.f32 1.0, %v690
      %v693 = vmul.f32 %v691, %v691
      %v694 = vmul.f32 %v692, %v692
      %v695 = vsub.f32 0.0, %v693
      %v696 = vsub.f32 0.0, %v694
      %v697 = vmul.f32 %v695, %v685
      %v698 = vmul.f32 %v696, %v686
      %v699 = vsel %vm366, %v697, 0.0
      %v700 = vsel %vm367, %v698, 0.0
      %v701 = vld [vmem:[%s322] sm:$0x3]
      %v702 = vld [vmem:[%s322 + $0x2] sm:$0x3]
      %v703 = vsel %vm371, %v701, -inf
      %v704 = vsel %vm371, %v702, -inf
      %v705 = vmax.f32 %v703, %v704
      %vm706 = vcmp.gt.f32.partialorder %v705, 0.7
      %vm707 = vcmp.ne.s32.totalorder %v354, 255
      %vm708 = vmand %vm706, %vm707
      %v709 = vsel %vm366, 1, 0
      %v710 = vsel %vm367, 1, 0
      %v711 = vrot.slane %v710, 7
      %v712 = vsel %vm461, %v709, %v711
      %vm713 = vcmp.ne.s32.totalorder %v712, 0
      %vm714 = vmand %vm708, %vm713
      %v715 = vsub.f32 0.0, %v685
      %v716 = vsub.f32 0.0, %v686
      %v719 = vrot.slane %v716, 7
      %v720 = vsel %vm461, %v715, %v719
      %v722 = vsel %vm714, %v720, 0.0
      %v723 = vld [vmem:[%s331] sm:$0x3]
      %v726 = vrot.slane %v700, 7
      %v727 = vsel %vm461, %v699, %v726
      %v729 = vadd.f32 %v723, %v727
      %730 = vst.msk [vmem:[%s331] sm:$0x3] %vm371, %v729
      %s731 = scalar_lea.vmem %s331, 2
      %v732 = vld [vmem:[%s731] sm:$0x3]
      %v733 = vadd.f32 %v732, %v722
      %734 = vst.msk [vmem:[%s731] sm:$0x3] %vm371, %v733
      %s735 = scalar_lea.vmem %s331, 4
      %v736 = vld [vmem:[%s735] sm:$0x3]
      %v737 = vsel %vm714, 1, 0
      %v738 = vcvt.s32.f32 %v737
      %v739 = vadd.f32 %v736, %v738
      %740 = vst.msk [vmem:[%s735] sm:$0x3] %vm371, %v739
      %s741 = smul.u32 %s19, 2
      %s742 = sadd.s32 %s741, %s20
      %p743 = scmp.lt.s32.totalorder %s742, 3
      %s744 = scalar_select %p743, %s742, 3
      %s745 = smul.addr %s744, 6
      %s746 = scalar_lea.vmem %s3, %s745
      // Predicated region
      $region37: #{loss_forward.1} parent=31 // pred_check
        %p747 = pneg %p157
      $region38: #{loss_forward.1} parent=31 // pred_check_branch
        %749 = sbr.rel (%p747) target = $region40
      $region39: #{loss_forward.1} parent=31 // pred_region
        %s750 = smul.u32 %s19, 2
        %s751 = sadd.s32 %s750, %s20
      $region40: #{loss_forward.1} parent=31 // pred_fallthru
        _
    $region32: #{loss_forward.1} parent=5 // pred_fallthru
      _
    %p752 = scmp.le.s32.totalorder 2, %s9
    // Predicated region
    $region41: #{loss_forward.1} parent=5 // pred_check
      %p753 = pneg %p752
    $region42: #{loss_forward.1} parent=5 // pred_check_branch
      %755 = sbr.rel (%p753) target = $region44
    $region43: #{loss_forward.1} parent=5 // pred_region
      %s756 = ssub.s32 %s9, 2
      // Predicated region
      $region45: #{loss_forward.1} parent=43 // pred_check
        %p757 = pneg %p163
      $region46: #{loss_forward.1} parent=43 // pred_check_branch
        %759 = sbr.rel (%p757) target = $region48
      $region47: #{loss_forward.1} parent=43 // pred_region
        %s760 = smul.u32 %s22, 2
        %s761 = sadd.s32 %s760, %s23
        %p762 = scmp.lt.s32.totalorder %s761, 3
        %s763 = scalar_select %p762, %s761, 3
        %s764 = smul.addr %s763, 6
        %s765 = scalar_lea.vmem %s3, %s764
      $region48: #{loss_forward.1} parent=43 // pred_fallthru
        _
    $region44: #{loss_forward.1} parent=5 // pred_fallthru
      _
  $region6: #{loss_forward.1} parent=0 // loop_footer
    %s13 = sadd.s32 1, %s9
  $region7: #{loss_forward.1} parent=0 // loop_footer_branch
    %8 = sbr.rel target = $region3
  $region8: #{loss_forward.1} parent=0 // loop_exit
    _

</llo_original>
